<compile_context>
chip_gen: v7x
topology: tpu7x:2x2x1
jax: 0.10.0
libtpu: 0.0.40
codegen_flags: <defaults>
</compile_context>

<pallas_src>
import math
import jax
import jax.numpy as jnp
from jax.experimental import pallas as pl
from jax.experimental.pallas import tpu as pltpu

LANE = 128  # TPU lane width: feature dims padded to this for dense vregs/stores


def _round_up(n, m):
    return ((n + m - 1) // m) * m


def _pad2d(a, rows, cols):
    return jnp.pad(a, ((0, rows - a.shape[0]), (0, cols - a.shape[1])))


def mlp_kernel(x_ref, w1_ref, b1_ref, w2_ref, b2_ref, w3_ref, b3_ref, o_ref):
    """One batch tile of the fused MLP.

    x_ref:  (TILE_M, K)           compute dtype (bf16)   -- tiled over batch
    w*_ref: (K,H)/(H,H)/(H,C)     compute dtype, lane-padded, VMEM-resident
    b*_ref: (1,H)/(1,H)/(1,C)     float32, VMEM-resident
    o_ref:  (TILE_M, C)           float32, lane-padded (C = 128)
    """
    cd = w1_ref.dtype
    # Layer 1: MXU matmul, f32 accumulation; bias add + ReLU in f32 (VPU).
    h1 = jnp.dot(x_ref[...], w1_ref[...], preferred_element_type=jnp.float32)
    h1 = jnp.maximum(h1 + b1_ref[...], 0.0)
    # Layer 2.
    h2 = jnp.dot(h1.astype(cd), w2_ref[...], preferred_element_type=jnp.float32)
    h2 = jnp.maximum(h2 + b2_ref[...], 0.0)
    # Layer 3: logits, no activation.
    out = jnp.dot(h2.astype(cd), w3_ref[...], preferred_element_type=jnp.float32)
    o_ref[...] = (out + b3_ref[...]).astype(o_ref.dtype)


def prepare_params(params, *, compute_dtype=jnp.bfloat16):
    """One-time weight prep: zero-pad feature dims to 128 lanes, cast MXU inputs.

    Exactness: padded w1 columns / b1 entries are zero so padded hidden units are
    ReLU(0)=0; padded w2/w3 rows are zero so they contribute nothing; padded
    logit columns are zero and get sliced off by the wrapper.
    """
    w1, b1, w2, b2, w3, b3 = params
    k = w1.shape[0]
    h = _round_up(w1.shape[1], LANE)
    c = _round_up(w3.shape[1], LANE)
    w1p = _pad2d(w1, k, h).astype(compute_dtype)
    w2p = _pad2d(w2, h, h).astype(compute_dtype)
    w3p = _pad2d(w3, h, c).astype(compute_dtype)
    b1p = _pad2d(b1.reshape(1, -1), 1, h).astype(jnp.float32)
    b2p = _pad2d(b2.reshape(1, -1), 1, h).astype(jnp.float32)
    b3p = _pad2d(b3.reshape(1, -1), 1, c).astype(jnp.float32)
    return (w1p, b1p, w2p, b2p, w3p, b3p)


def mlp_forward(x, padded_params, *, input_shape, classes,
                experiment="classification", tile_m=512):
    """Pallas-backed forward pass matching the PyTorch MLP."""
    w1, b1, w2, b2, w3, b3 = padded_params
    cd = w1.dtype

    if experiment == "classification":
        x2d = x.reshape(-1, input_shape)          # torch x.view(-1, input_shape)
        out_batch_shape = (x2d.shape[0],)
    else:
        # nn.Linear acts on the last axis; flatten leading dims, restore after.
        assert x.shape[-1] == input_shape, "last dim of x must equal input_shape"
        out_batch_shape = x.shape[:-1]
        x2d = x.reshape(-1, input_shape)

    m, k = x2d.shape
    h_pad = w1.shape[1]
    c_pad = w3.shape[1]

    # Batch tile: multiple of the sublane packing (16 rows for bf16), large
    # enough to amortize per-step overhead, capped so it stays tiny in VMEM
    # (also safe for v7x's 64 MiB VMEM).
    row_align = 16 if jnp.dtype(cd).itemsize < 4 else 8
    tm = min(_round_up(tile_m, row_align), _round_up(m, row_align))
    m_pad = _round_up(m, tm)
    grid = (m_pad // tm,)

    x_p = jnp.pad(x2d, ((0, m_pad - m), (0, 0))).astype(cd)

    flops = 2 * m_pad * (k * h_pad + h_pad * h_pad + h_pad * c_pad)
    bytes_accessed = (
        x_p.size * x_p.dtype.itemsize
        + m_pad * c_pad * 4
        + sum(int(p.size) * p.dtype.itemsize for p in padded_params)
    )

    out_p = pl.pallas_call(
        mlp_kernel,
        out_shape=jax.ShapeDtypeStruct((m_pad, c_pad), jnp.float32),
        grid=grid,
        in_specs=[
            pl.BlockSpec((tm, k), lambda i: (i, 0)),          # x: tiled over batch
            pl.BlockSpec((k, h_pad), lambda i: (0, 0)),       # w1 (resident)
            pl.BlockSpec((1, h_pad), lambda i: (0, 0)),       # b1 (resident)
            pl.BlockSpec((h_pad, h_pad), lambda i: (0, 0)),   # w2 (resident)
            pl.BlockSpec((1, h_pad), lambda i: (0, 0)),       # b2 (resident)
            pl.BlockSpec((h_pad, c_pad), lambda i: (0, 0)),   # w3 (resident)
            pl.BlockSpec((1, c_pad), lambda i: (0, 0)),       # b3 (resident)
        ],
        out_specs=pl.BlockSpec((tm, c_pad), lambda i: (i, 0)),
        compiler_params=pltpu.CompilerParams(
            dimension_semantics=("parallel",)),
        cost_estimate=pl.CostEstimate(
            flops=flops, transcendentals=0, bytes_accessed=bytes_accessed),
    )(x_p, w1, b1, w2, b2, w3, b3)

    out = out_p[:m, :classes]
    return out.reshape(*out_batch_shape, classes)


def init_linear(key, fan_in, fan_out):
    """PyTorch nn.Linear default init: U(-1/sqrt(fan_in), 1/sqrt(fan_in)).
    Weight returned pre-transposed as (fan_in, fan_out) so kernel does x @ W."""
    kw, kb = jax.random.split(key)
    bound = 1.0 / math.sqrt(fan_in)
    w = jax.random.uniform(kw, (fan_in, fan_out), jnp.float32, -bound, bound)
    b = jax.random.uniform(kb, (1, fan_out), jnp.float32, -bound, bound)
    return w, b


if __name__ == "__main__":
    model_params = {
        "input_shape": 64,
        "classes": 10,
        "batch_size": 2,
        "hidden_units": 32,
        "experiment": "classification",
    }

    key = jax.random.PRNGKey(0)
    k_x, k1, k2, k3 = jax.random.split(key, 4)

    # Example input consistent with view(-1, input_shape): (B=2, C=4, S=16) -> (2, 64)
    x = jax.random.normal(k_x, (2, 4, 16), jnp.float32)

    w1, b1 = init_linear(k1, model_params["input_shape"], model_params["hidden_units"])
    w2, b2 = init_linear(k2, model_params["hidden_units"], model_params["hidden_units"])
    w3, b3 = init_linear(k3, model_params["hidden_units"], model_params["classes"])
    params = (w1, b1, w2, b2, w3, b3)

    compute_dtype = jnp.bfloat16  # MXU inputs; accumulation stays f32
    padded_params = prepare_params(params, compute_dtype=compute_dtype)

    out = mlp_forward(
        x,
        padded_params,
        input_shape=model_params["input_shape"],
        classes=model_params["classes"],
        experiment=model_params["experiment"],
    )
    out = jax.block_until_ready(out)

    # Pure-JAX reference of the same math (bf16 MXU inputs, f32 accumulation).
    xr = x.reshape(-1, model_params["input_shape"])
    cdt = compute_dtype
    ref = jnp.maximum(
        jnp.dot(xr.astype(cdt), w1.astype(cdt), preferred_element_type=jnp.float32) + b1, 0.0)
    ref = jnp.maximum(
        jnp.dot(ref.astype(cdt), w2.astype(cdt), preferred_element_type=jnp.float32) + b2, 0.0)
    ref = jnp.dot(ref.astype(cdt), w3.astype(cdt), preferred_element_type=jnp.float32) + b3

    assert out.shape == (2, model_params["classes"])
    assert jnp.allclose(out, ref, atol=2e-3, rtol=2e-3), float(jnp.max(jnp.abs(out - ref)))

    print("KERNEL_OK")
</pallas_src>

<mosaic_0001>
module attributes {stable_mosaic.version = 11 : i64} {
  func.func @mlp_kernel(%arg0: i32, %arg1: memref<16x64xbf16, #tpu.memory_space<vmem>>, %arg2: memref<64x128xbf16, #tpu.memory_space<vmem>>, %arg3: memref<1x128xf32, #tpu.memory_space<vmem>>, %arg4: memref<128x128xbf16, #tpu.memory_space<vmem>>, %arg5: memref<1x128xf32, #tpu.memory_space<vmem>>, %arg6: memref<128x128xbf16, #tpu.memory_space<vmem>>, %arg7: memref<1x128xf32, #tpu.memory_space<vmem>>, %arg8: memref<16x128xf32, #tpu.memory_space<vmem>>) attributes {dimension_semantics = [#tpu.dimension_semantics<parallel>], iteration_bounds = array<i64: 1>, scalar_prefetch = 0 : i64, scratch_operands = 0 : i64, tpu.core_type = #tpu.core_type<tc>, window_params = [{transform_indices = @transform_0, window_bounds = array<i64: 16, 64>}, {pipeline_mode = #tpu.pipeline_mode<synchronous>, transform_indices = @transform_1, window_bounds = array<i64: 64, 128>}, {pipeline_mode = #tpu.pipeline_mode<synchronous>, transform_indices = @transform_2, window_bounds = array<i64: 1, 128>}, {pipeline_mode = #tpu.pipeline_mode<synchronous>, transform_indices = @transform_3, window_bounds = array<i64: 128, 128>}, {pipeline_mode = #tpu.pipeline_mode<synchronous>, transform_indices = @transform_4, window_bounds = array<i64: 1, 128>}, {pipeline_mode = #tpu.pipeline_mode<synchronous>, transform_indices = @transform_5, window_bounds = array<i64: 128, 128>}, {pipeline_mode = #tpu.pipeline_mode<synchronous>, transform_indices = @transform_6, window_bounds = array<i64: 1, 128>}, {transform_indices = @transform_7, window_bounds = array<i64: 16, 128>}]} {
    %c0 = arith.constant 0 : index
    %c0_0 = arith.constant 0 : index
    %0 = vector.load %arg1[%c0, %c0_0] : memref<16x64xbf16, #tpu.memory_space<vmem>>, vector<16x64xbf16>
    %c0_1 = arith.constant 0 : index
    %c0_2 = arith.constant 0 : index
    %1 = vector.load %arg2[%c0_1, %c0_2] : memref<64x128xbf16, #tpu.memory_space<vmem>>, vector<64x128xbf16>
    %cst = arith.constant dense<0.000000e+00> : vector<16x128xf32>
    %2 = tpu.matmul %0, %1, %cst {dimension_numbers = #tpu.dot_dimension_numbers<[1], [0], [0], [1], [0, 0, 1, 1], [], []>} : vector<16x64xbf16>, vector<64x128xbf16>, vector<16x128xf32> -> vector<16x128xf32>
    %c0_3 = arith.constant 0 : index
    %c0_4 = arith.constant 0 : index
    %3 = vector.load %arg3[%c0_3, %c0_4] : memref<1x128xf32, #tpu.memory_space<vmem>>, vector<1x128xf32>
    %4 = vector.broadcast %3 : vector<1x128xf32> to vector<16x128xf32>
    %5 = arith.addf %2, %4 : vector<16x128xf32>
    %cst_5 = arith.constant 0.000000e+00 : f32
    %6 = vector.broadcast %cst_5 : f32 to vector<16x128xf32>
    %7 = arith.maximumf %5, %6 : vector<16x128xf32>
    %8 = arith.truncf %7 : vector<16x128xf32> to vector<16x128xbf16>
    %c0_6 = arith.constant 0 : index
    %c0_7 = arith.constant 0 : index
    %9 = vector.load %arg4[%c0_6, %c0_7] : memref<128x128xbf16, #tpu.memory_space<vmem>>, vector<128x128xbf16>
    %cst_8 = arith.constant dense<0.000000e+00> : vector<16x128xf32>
    %10 = tpu.matmul %8, %9, %cst_8 {dimension_numbers = #tpu.dot_dimension_numbers<[1], [0], [0], [1], [0, 0, 1, 1], [], []>} : vector<16x128xbf16>, vector<128x128xbf16>, vector<16x128xf32> -> vector<16x128xf32>
    %c0_9 = arith.constant 0 : index
    %c0_10 = arith.constant 0 : index
    %11 = vector.load %arg5[%c0_9, %c0_10] : memref<1x128xf32, #tpu.memory_space<vmem>>, vector<1x128xf32>
    %12 = vector.broadcast %11 : vector<1x128xf32> to vector<16x128xf32>
    %13 = arith.addf %10, %12 : vector<16x128xf32>
    %cst_11 = arith.constant 0.000000e+00 : f32
    %14 = vector.broadcast %cst_11 : f32 to vector<16x128xf32>
    %15 = arith.maximumf %13, %14 : vector<16x128xf32>
    %16 = arith.truncf %15 : vector<16x128xf32> to vector<16x128xbf16>
    %c0_12 = arith.constant 0 : index
    %c0_13 = arith.constant 0 : index
    %17 = vector.load %arg6[%c0_12, %c0_13] : memref<128x128xbf16, #tpu.memory_space<vmem>>, vector<128x128xbf16>
    %cst_14 = arith.constant dense<0.000000e+00> : vector<16x128xf32>
    %18 = tpu.matmul %16, %17, %cst_14 {dimension_numbers = #tpu.dot_dimension_numbers<[1], [0], [0], [1], [0, 0, 1, 1], [], []>} : vector<16x128xbf16>, vector<128x128xbf16>, vector<16x128xf32> -> vector<16x128xf32>
    %c0_15 = arith.constant 0 : index
    %c0_16 = arith.constant 0 : index
    %19 = vector.load %arg7[%c0_15, %c0_16] : memref<1x128xf32, #tpu.memory_space<vmem>>, vector<1x128xf32>
    %20 = vector.broadcast %19 : vector<1x128xf32> to vector<16x128xf32>
    %21 = arith.addf %18, %20 : vector<16x128xf32>
    %c0_17 = arith.constant 0 : index
    %c0_18 = arith.constant 0 : index
    %22 = vector.load %arg8[%c0_17, %c0_18] : memref<16x128xf32, #tpu.memory_space<vmem>>, vector<16x128xf32>
    tpu.vector_store %arg8[%c0_17, %c0_18], %21 {strides = array<i32>} : memref<16x128xf32, #tpu.memory_space<vmem>>, vector<16x128xf32>,
    return
  }
  func.func @transform_0(%arg0: i32) -> (i32, i32) {
    %c0_i32 = arith.constant 0 : i32
    %c0_i32_0 = arith.constant 0 : i32
    return %arg0, %c0_i32 : i32, i32
  }
  func.func @transform_1(%arg0: i32) -> (i32, i32) {
    %c0_i32 = arith.constant 0 : i32
    %c0_i32_0 = arith.constant 0 : i32
    %c0_i32_1 = arith.constant 0 : i32
    return %c0_i32, %c0_i32_0 : i32, i32
  }
  func.func @transform_2(%arg0: i32) -> (i32, i32) {
    %c0_i32 = arith.constant 0 : i32
    %c0_i32_0 = arith.constant 0 : i32
    %c0_i32_1 = arith.constant 0 : i32
    return %c0_i32, %c0_i32_0 : i32, i32
  }
  func.func @transform_3(%arg0: i32) -> (i32, i32) {
    %c0_i32 = arith.constant 0 : i32
    %c0_i32_0 = arith.constant 0 : i32
    %c0_i32_1 = arith.constant 0 : i32
    return %c0_i32, %c0_i32_0 : i32, i32
  }
  func.func @transform_4(%arg0: i32) -> (i32, i32) {
    %c0_i32 = arith.constant 0 : i32
    %c0_i32_0 = arith.constant 0 : i32
    %c0_i32_1 = arith.constant 0 : i32
    return %c0_i32, %c0_i32_0 : i32, i32
  }
  func.func @transform_5(%arg0: i32) -> (i32, i32) {
    %c0_i32 = arith.constant 0 : i32
    %c0_i32_0 = arith.constant 0 : i32
    %c0_i32_1 = arith.constant 0 : i32
    return %c0_i32, %c0_i32_0 : i32, i32
  }
  func.func @transform_6(%arg0: i32) -> (i32, i32) {
    %c0_i32 = arith.constant 0 : i32
    %c0_i32_0 = arith.constant 0 : i32
    %c0_i32_1 = arith.constant 0 : i32
    return %c0_i32, %c0_i32_0 : i32, i32
  }
  func.func @transform_7(%arg0: i32) -> (i32, i32) {
    %c0_i32 = arith.constant 0 : i32
    %c0_i32_0 = arith.constant 0 : i32
    return %arg0, %c0_i32 : i32, i32
  }
}

</mosaic_0001>

<llo_original>
// kernel: tpu_custom_call.1
$region0: #{tpu_custom_call.1}
  #allocation0 [shape = 'u32[]', space=smem, size = 0x4, offset = 0x4, fixed_abs, tag = 'smem constant byte address 0x4 - core index']
  #allocation1 [shape = 'u32[144,128]{1,0:T(1,128)}', space=vmem, size = 0x12000, scoped, tag = 'internal scratch']
  %s0 = inlined_call_operand.hbm [shape: bf16[16,64], index: 0, kind: input, shape index: {}]
  %s1 = inlined_call_operand.hbm [shape: bf16[64,128], index: 1, kind: input, shape index: {}]
  %s2 = inlined_call_operand.vmem [shape: f32[1,128], index: 2, kind: input, shape index: {}]
  %s3 = inlined_call_operand.hbm [shape: bf16[128,128], index: 3, kind: input, shape index: {}]
  %s4 = inlined_call_operand.vmem [shape: f32[1,128], index: 4, kind: input, shape index: {}]
  %s5 = inlined_call_operand.hbm [shape: bf16[128,128], index: 5, kind: input, shape index: {}]
  %s6 = inlined_call_operand.vmem [shape: f32[1,128], index: 6, kind: input, shape index: {}]
  %s7 = inlined_call_operand.hbm [shape: f32[16,128], index: 7, kind: output, shape index: {}]
  %s8 = sld [smem:[#allocation0]]
  $region54: #{tpu_custom_call.1} parent=0
    _
  %s10 = ssub.s32 1, %s8
  %s11 = scalar_select 0, %s10, %s8
  $region1: #{tpu_custom_call.1} parent=0
    #allocation2 [shape = 'u8[4096]{0}', space=vmem, size = 0x1000, scoped, tag = 'input window, operand 0, single buffered']
    #allocation3 [shape = 's32[1]{0}', space=sflag, size = 0x4, scoped, tag = 'scoped memory for tpu_custom_call.1']
    #allocation4 [shape = 's32[1]{0}', space=sflag, size = 0x4, scoped, tag = 'scoped memory for tpu_custom_call.1']
    #allocation5 [shape = 'u8[16384]{0}', space=vmem, size = 0x4000, scoped, tag = 'input window, operand 1, single buffered']
    #allocation6 [shape = 's32[1]{0}', space=sflag, size = 0x4, scoped, tag = 'scoped memory for tpu_custom_call.1']
    #allocation7 [shape = 'u8[32768]{0}', space=vmem, size = 0x8000, scoped, tag = 'input window, operand 3, single buffered']
    #allocation8 [shape = 'u8[32768]{0}', space=vmem, size = 0x8000, scoped, tag = 'input window, operand 5, single buffered']
    #allocation9 [shape = 's32[1]{0}', space=sflag, size = 0x4, scoped, tag = 'scoped memory for tpu_custom_call.1']
    #allocation10 [shape = 'u8[8192]{0}', space=vmem, size = 0x2000, scoped, tag = 'output window, operand 0, single buffered']
    %12 = vsyncpa [#allocation3], 0
    %13 = vsyncpa [#allocation6], 0
    %14 = vsyncpa [#allocation9], 0
    %15 = vsyncpa [#allocation4], 0
    // Predicated region
    $region2: #{tpu_custom_call.1} parent=1 // pred_check
      _
    $region3: #{tpu_custom_call.1} parent=1 // pred_check_branch
      %17 = sbr.rel (0) target = $region5
    $region4: #{tpu_custom_call.1} parent=1 // pred_region
      %s19 = ssub.s32 128, 128
      %20 = vsyncadd [#allocation3], %s19
      %s21 = sshll.u32 [#allocation2], 4
      %s22 = int_to_ptr.vmem [resolvable:$true] %s21
      %27 = dma.hbm_to_vmem [thread:$0]  %s0, 128, %s22, [#allocation3], 64, 64, 4
    $region5: #{tpu_custom_call.1} parent=1 // pred_fallthru
      _
    // Predicated region
    $region6: #{tpu_custom_call.1} parent=1 // pred_check
      _
    $region7: #{tpu_custom_call.1} parent=1 // pred_check_branch
      %29 = sbr.rel (0) target = $region9
    $region8: #{tpu_custom_call.1} parent=1 // pred_region
      %s31 = ssub.s32 512, 512
      %32 = vsyncadd [#allocation6], %s31
      %s33 = sshll.u32 [#allocation5], 4
      %s34 = int_to_ptr.vmem [resolvable:$true] %s33
      %39 = dma.hbm_to_vmem [thread:$0]  %s1, 512, %s34, [#allocation6], 64, 64, 4
    $region9: #{tpu_custom_call.1} parent=1 // pred_fallthru
      _
    // Predicated region
    $region10: #{tpu_custom_call.1} parent=1 // pred_check
      _
    $region11: #{tpu_custom_call.1} parent=1 // pred_check_branch
      %41 = sbr.rel (0) target = $region13
    $region12: #{tpu_custom_call.1} parent=1 // pred_region
      _
    $region13: #{tpu_custom_call.1} parent=1 // pred_fallthru
      _
    // Predicated region
    $region14: #{tpu_custom_call.1} parent=1 // pred_check
      _
    $region15: #{tpu_custom_call.1} parent=1 // pred_check_branch
      %43 = sbr.rel (0) target = $region17
    $region16: #{tpu_custom_call.1} parent=1 // pred_region
      %s45 = ssub.s32 1024, 1024
      %46 = vsyncadd [#allocation6], %s45
      %s47 = sshll.u32 [#allocation7], 4
      %s48 = int_to_ptr.vmem [resolvable:$true] %s47
      %53 = dma.hbm_to_vmem [thread:$0]  %s3, 1024, %s48, [#allocation6], 64, 64, 4
    $region17: #{tpu_custom_call.1} parent=1 // pred_fallthru
      _
    // Predicated region
    $region18: #{tpu_custom_call.1} parent=1 // pred_check
      _
    $region19: #{tpu_custom_call.1} parent=1 // pred_check_branch
      %55 = sbr.rel (0) target = $region21
    $region20: #{tpu_custom_call.1} parent=1 // pred_region
      _
    $region21: #{tpu_custom_call.1} parent=1 // pred_fallthru
      _
    // Predicated region
    $region22: #{tpu_custom_call.1} parent=1 // pred_check
      _
    $region23: #{tpu_custom_call.1} parent=1 // pred_check_branch
      %57 = sbr.rel (0) target = $region25
    $region24: #{tpu_custom_call.1} parent=1 // pred_region
      %s59 = ssub.s32 1024, 1024
      %60 = vsyncadd [#allocation9], %s59
      %s61 = sshll.u32 [#allocation8], 4
      %s62 = int_to_ptr.vmem [resolvable:$true] %s61
      %67 = dma.hbm_to_vmem [thread:$0]  %s5, 1024, %s62, [#allocation9], 64, 64, 4
    $region25: #{tpu_custom_call.1} parent=1 // pred_fallthru
      _
    // Predicated region
    $region26: #{tpu_custom_call.1} parent=1 // pred_check
      _
    $region27: #{tpu_custom_call.1} parent=1 // pred_check_branch
      %69 = sbr.rel (0) target = $region29
    $region28: #{tpu_custom_call.1} parent=1 // pred_region
      _
    $region29: #{tpu_custom_call.1} parent=1 // pred_fallthru
      _
    // Predicated region
    $region30: #{tpu_custom_call.1} parent=1 // pred_check
      _
    $region31: #{tpu_custom_call.1} parent=1 // pred_check_branch
      %71 = sbr.rel (0) target = $region33
    $region32: #{tpu_custom_call.1} parent=1 // pred_region
      %72 = dma.done [#allocation3], 128
    $region33: #{tpu_custom_call.1} parent=1 // pred_fallthru
      _
    // Predicated region
    $region34: #{tpu_custom_call.1} parent=1 // pred_check
      _
    $region35: #{tpu_custom_call.1} parent=1 // pred_check_branch
      %74 = sbr.rel (0) target = $region37
    $region36: #{tpu_custom_call.1} parent=1 // pred_region
      %75 = dma.done [#allocation6], 512
    $region37: #{tpu_custom_call.1} parent=1 // pred_fallthru
      _
    // Predicated region
    $region38: #{tpu_custom_call.1} parent=1 // pred_check
      _
    $region39: #{tpu_custom_call.1} parent=1 // pred_check_branch
      %77 = sbr.rel (0) target = $region41
    $region40: #{tpu_custom_call.1} parent=1 // pred_region
      %78 = dma.done [#allocation6], 1024
    $region41: #{tpu_custom_call.1} parent=1 // pred_fallthru
      _
    // Predicated region
    $region42: #{tpu_custom_call.1} parent=1 // pred_check
      _
    $region43: #{tpu_custom_call.1} parent=1 // pred_check_branch
      %80 = sbr.rel (0) target = $region45
    $region44: #{tpu_custom_call.1} parent=1 // pred_region
      %81 = dma.done [#allocation9], 1024
    $region45: #{tpu_custom_call.1} parent=1 // pred_fallthru
      _
    %v83 = vld [vmem:[#allocation2] sm:$0xf]
    %v84 = vld [vmem:[#allocation2 + $0x4] sm:$0xf]
    %v85 = vld [vmem:[#allocation5] sm:$0xf]
    %v86 = vld [vmem:[#allocation5 + $0x4] sm:$0xf]
    %v87 = vld [vmem:[#allocation5 + $0x8] sm:$0xf]
    %v88 = vld [vmem:[#allocation5 + $0xc] sm:$0xf]
    %v89 = vld [vmem:[#allocation5 + $0x10] sm:$0xf]
    %v90 = vld [vmem:[#allocation5 + $0x14] sm:$0xf]
    %v91 = vld [vmem:[#allocation5 + $0x18] sm:$0xf]
    %v92 = vld [vmem:[#allocation5 + $0x1c] sm:$0xf]
    %v93 = vld [vmem:[%s2] sm:$0x1]
    %v95 = vlaneseq
    %v96 = vshrl.u32 %v95, 7
    %v97 = vsub.s32 0, %v96
    %v98 = vrot.slane %v93, %v97
    %v102 = vunpack.c.l.b16 %v83
    %v103 = vunpack.c.l.b16 %v84
    %v104 = vpack.c.b16 %v103, %v102
    %v113 = vunpack.c.l.b16 %v85
    %v114 = vunpack.c.l.b16 %v86
    %v115 = vunpack.c.l.b16 %v87
    %v116 = vunpack.c.l.b16 %v88
    %v117 = vunpack.c.l.b16 %v89
    %v118 = vunpack.c.l.b16 %v90
    %v119 = vunpack.c.l.b16 %v91
    %v120 = vunpack.c.l.b16 %v92
    %v121 = vpack.c.b16 %v114, %v113
    %v122 = vpack.c.b16 %v116, %v115
    %v123 = vpack.c.b16 %v118, %v117
    %v124 = vpack.c.b16 %v120, %v119
    %vm129 = vcmask 523264
    %v131 = vsel %vm129, %v104, 0
    %133 = vmatprep.subr.bf16.mxu0 0
    %134 = vmatpush1.bf16.msra.mxu0 %v121
    %135 = vmatprep.subr.bf16.mxu0 0
    %136 = vmatpush1.bf16.msra.mxu0 %v122
    %137 = vmatprep.subr.bf16.mxu0 0
    %138 = vmatpush1.bf16.msra.mxu0 %v123
    %139 = vmatprep.subr.bf16.mxu0 0
    %140 = vmatpush1.bf16.msra.mxu0 %v124
    %141 = vmatprep.subr.bf16.mxu0 0
    %142 = vmatpush1.bf16.msra.mxu0 0
    %143 = vmatprep.subr.bf16.mxu0 0
    %144 = vmatpush1.bf16.msra.mxu0 0
    %145 = vmatprep.subr.bf16.mxu0 0
    %146 = vmatpush1.bf16.msra.mxu0 0
    %147 = vmatprep.subr.bf16.mxu0 0
    %148 = vmatpush1.bf16.msra.mxu0 0
    %149 = vmatprep.subr.bf16.mxu0 0
    %150 = vmatpush1.bf16.msra.mxu0 0
    %151 = vmatprep.subr.bf16.mxu0 0
    %152 = vmatpush1.bf16.msra.mxu0 0
    %153 = vmatprep.subr.bf16.mxu0 0
    %154 = vmatpush1.bf16.msra.mxu0 0
    %155 = vmatprep.subr.bf16.mxu0 0
    %156 = vmatpush1.bf16.msra.mxu0 0
    %157 = vmatprep.subr.bf16.mxu0 0
    %158 = vmatpush1.bf16.msra.mxu0 0
    %159 = vmatprep.subr.bf16.mxu0 0
    %160 = vmatpush1.bf16.msra.mxu0 0
    %161 = vmatprep.subr.bf16.mxu0 0
    %162 = vmatpush1.bf16.msra.mxu0 0
    %163 = vmatprep.subr.bf16.mxu0 0
    %164 = vmatpush1.bf16.msra.mxu0 0
    %165 = vmatprep.mubr.bf16.mxu0 0
    %166 = vmatmul.mubr.bf16.gmra.mrb[0].mxu0 %v131
    %v167 = vpop.f32.mrb[0].mxu0
    %v168 = vadd.f32 %v98, %v167
    %v169 = vpop.f32.mrb[0].mxu0
    %v170 = vpop.f32.mrb[0].mxu0
    %v171 = vadd.f32 %v98, %v170
    %v172 = vpop.f32.mrb[0].mxu0
    %173 = vdwg.mxu0
    %v174 = vmax.f32 %v168, 0.0
    %v175 = vmax.f32 %v171, 0.0
    %v176 = vpack.c.bf16 %v175, %v174
    %v177 = vld [vmem:[#allocation7] sm:$0xf]
    %v178 = vld [vmem:[#allocation7 + $0x4] sm:$0xf]
    %v179 = vld [vmem:[#allocation7 + $0x8] sm:$0xf]
    %v180 = vld [vmem:[#allocation7 + $0xc] sm:$0xf]
    %v181 = vld [vmem:[#allocation7 + $0x10] sm:$0xf]
    %v182 = vld [vmem:[#allocation7 + $0x14] sm:$0xf]
    %v183 = vld [vmem:[#allocation7 + $0x18] sm:$0xf]
    %v184 = vld [vmem:[#allocation7 + $0x1c] sm:$0xf]
    %v185 = vld [vmem:[#allocation7 + $0x20] sm:$0xf]
    %v186 = vld [vmem:[#allocation7 + $0x24] sm:$0xf]
    %v187 = vld [vmem:[#allocation7 + $0x28] sm:$0xf]
    %v188 = vld [vmem:[#allocation7 + $0x2c] sm:$0xf]
    %v189 = vld [vmem:[#allocation7 + $0x30] sm:$0xf]
    %v190 = vld [vmem:[#allocation7 + $0x34] sm:$0xf]
    %v191 = vld [vmem:[#allocation7 + $0x38] sm:$0xf]
    %v192 = vld [vmem:[#allocation7 + $0x3c] sm:$0xf]
    %v193 = vld [vmem:[%s4] sm:$0x1]
    %v195 = vlaneseq
    %v196 = vshrl.u32 %v195, 7
    %v197 = vsub.s32 0, %v196
    %v198 = vrot.slane %v193, %v197
    %v216 = vunpack.c.l.b16 %v177
    %v217 = vunpack.c.l.b16 %v178
    %v218 = vunpack.c.l.b16 %v179
    %v219 = vunpack.c.l.b16 %v180
    %v220 = vunpack.c.l.b16 %v181
    %v221 = vunpack.c.l.b16 %v182
    %v222 = vunpack.c.l.b16 %v183
    %v223 = vunpack.c.l.b16 %v184
    %v224 = vunpack.c.l.b16 %v185
    %v225 = vunpack.c.l.b16 %v186
    %v226 = vunpack.c.l.b16 %v187
    %v227 = vunpack.c.l.b16 %v188
    %v228 = vunpack.c.l.b16 %v189
    %v229 = vunpack.c.l.b16 %v190
    %v230 = vunpack.c.l.b16 %v191
    %v231 = vunpack.c.l.b16 %v192
    %v232 = vpack.c.b16 %v217, %v216
    %v233 = vpack.c.b16 %v219, %v218
    %v234 = vpack.c.b16 %v221, %v220
    %v235 = vpack.c.b16 %v223, %v222
    %v236 = vpack.c.b16 %v225, %v224
    %v237 = vpack.c.b16 %v227, %v226
    %v238 = vpack.c.b16 %v229, %v228
    %v239 = vpack.c.b16 %v231, %v230
    %248 = vmatprep.subr.bf16.mxu0 0
    %249 = vmatpush1.bf16.msra.mxu0 %v232
    %250 = vmatprep.subr.bf16.mxu0 0
    %251 = vmatpush1.bf16.msra.mxu0 %v233
    %252 = vmatprep.subr.bf16.mxu0 0
    %253 = vmatpush1.bf16.msra.mxu0 %v234
    %254 = vmatprep.subr.bf16.mxu0 0
    %255 = vmatpush1.bf16.msra.mxu0 %v235
    %256 = vmatprep.subr.bf16.mxu0 0
    %257 = vmatpush1.bf16.msra.mxu0 %v236
    %258 = vmatprep.subr.bf16.mxu0 0
    %259 = vmatpush1.bf16.msra.mxu0 %v237
    %260 = vmatprep.subr.bf16.mxu0 0
    %261 = vmatpush1.bf16.msra.mxu0 %v238
    %262 = vmatprep.subr.bf16.mxu0 0
    %263 = vmatpush1.bf16.msra.mxu0 %v239
    %264 = vmatprep.subr.bf16.mxu0 0
    %265 = vmatpush1.bf16.msra.mxu0 0
    %266 = vmatprep.subr.bf16.mxu0 0
    %267 = vmatpush1.bf16.msra.mxu0 0
    %268 = vmatprep.subr.bf16.mxu0 0
    %269 = vmatpush1.bf16.msra.mxu0 0
    %270 = vmatprep.subr.bf16.mxu0 0
    %271 = vmatpush1.bf16.msra.mxu0 0
    %272 = vmatprep.subr.bf16.mxu0 0
    %273 = vmatpush1.bf16.msra.mxu0 0
    %274 = vmatprep.subr.bf16.mxu0 0
    %275 = vmatpush1.bf16.msra.mxu0 0
    %276 = vmatprep.subr.bf16.mxu0 0
    %277 = vmatpush1.bf16.msra.mxu0 0
    %278 = vmatprep.subr.bf16.mxu0 0
    %279 = vmatpush1.bf16.msra.mxu0 0
    %280 = vmatprep.mubr.bf16.mxu0 0
    %281 = vmatmul.mubr.bf16.gmra.mrb[0].mxu0 %v176
    %v282 = vpop.f32.mrb[0].mxu0
    %v283 = vadd.f32 %v198, %v282
    %v284 = vpop.f32.mrb[0].mxu0
    %v285 = vpop.f32.mrb[0].mxu0
    %v286 = vadd.f32 %v198, %v285
    %v287 = vpop.f32.mrb[0].mxu0
    %288 = vdwg.mxu0
    %v289 = vmax.f32 %v283, 0.0
    %v290 = vmax.f32 %v286, 0.0
    %v291 = vpack.c.bf16 %v290, %v289
    %v292 = vld [vmem:[#allocation8] sm:$0xf]
    %v293 = vld [vmem:[#allocation8 + $0x4] sm:$0xf]
    %v294 = vld [vmem:[#allocation8 + $0x8] sm:$0xf]
    %v295 = vld [vmem:[#allocation8 + $0xc] sm:$0xf]
    %v296 = vld [vmem:[#allocation8 + $0x10] sm:$0xf]
    %v297 = vld [vmem:[#allocation8 + $0x14] sm:$0xf]
    %v298 = vld [vmem:[#allocation8 + $0x18] sm:$0xf]
    %v299 = vld [vmem:[#allocation8 + $0x1c] sm:$0xf]
    %v300 = vld [vmem:[#allocation8 + $0x20] sm:$0xf]
    %v301 = vld [vmem:[#allocation8 + $0x24] sm:$0xf]
    %v302 = vld [vmem:[#allocation8 + $0x28] sm:$0xf]
    %v303 = vld [vmem:[#allocation8 + $0x2c] sm:$0xf]
    %v304 = vld [vmem:[#allocation8 + $0x30] sm:$0xf]
    %v305 = vld [vmem:[#allocation8 + $0x34] sm:$0xf]
    %v306 = vld [vmem:[#allocation8 + $0x38] sm:$0xf]
    %v307 = vld [vmem:[#allocation8 + $0x3c] sm:$0xf]
    %v308 = vld [vmem:[%s6] sm:$0x1]
    %v310 = vlaneseq
    %v311 = vshrl.u32 %v310, 7
    %v312 = vsub.s32 0, %v311
    %v313 = vrot.slane %v308, %v312
    %v331 = vunpack.c.l.b16 %v292
    %v332 = vunpack.c.l.b16 %v293
    %v333 = vunpack.c.l.b16 %v294
    %v334 = vunpack.c.l.b16 %v295
    %v335 = vunpack.c.l.b16 %v296
    %v336 = vunpack.c.l.b16 %v297
    %v337 = vunpack.c.l.b16 %v298
    %v338 = vunpack.c.l.b16 %v299
    %v339 = vunpack.c.l.b16 %v300
    %v340 = vunpack.c.l.b16 %v301
    %v341 = vunpack.c.l.b16 %v302
    %v342 = vunpack.c.l.b16 %v303
    %v343 = vunpack.c.l.b16 %v304
    %v344 = vunpack.c.l.b16 %v305
    %v345 = vunpack.c.l.b16 %v306
    %v346 = vunpack.c.l.b16 %v307
    %v347 = vpack.c.b16 %v332, %v331
    %v348 = vpack.c.b16 %v334, %v333
    %v349 = vpack.c.b16 %v336, %v335
    %v350 = vpack.c.b16 %v338, %v337
    %v351 = vpack.c.b16 %v340, %v339
    %v352 = vpack.c.b16 %v342, %v341
    %v353 = vpack.c.b16 %v344, %v343
    %v354 = vpack.c.b16 %v346, %v345
    %363 = vmatprep.subr.bf16.mxu0 0
    %364 = vmatpush1.bf16.msra.mxu0 %v347
    %365 = vmatprep.subr.bf16.mxu0 0
    %366 = vmatpush1.bf16.msra.mxu0 %v348
    %367 = vmatprep.subr.bf16.mxu0 0
    %368 = vmatpush1.bf16.msra.mxu0 %v349
    %369 = vmatprep.subr.bf16.mxu0 0
    %370 = vmatpush1.bf16.msra.mxu0 %v350
    %371 = vmatprep.subr.bf16.mxu0 0
    %372 = vmatpush1.bf16.msra.mxu0 %v351
    %373 = vmatprep.subr.bf16.mxu0 0
    %374 = vmatpush1.bf16.msra.mxu0 %v352
    %375 = vmatprep.subr.bf16.mxu0 0
    %376 = vmatpush1.bf16.msra.mxu0 %v353
    %377 = vmatprep.subr.bf16.mxu0 0
    %378 = vmatpush1.bf16.msra.mxu0 %v354
    %379 = vmatprep.subr.bf16.mxu0 0
    %380 = vmatpush1.bf16.msra.mxu0 0
    %381 = vmatprep.subr.bf16.mxu0 0
    %382 = vmatpush1.bf16.msra.mxu0 0
    %383 = vmatprep.subr.bf16.mxu0 0
    %384 = vmatpush1.bf16.msra.mxu0 0
    %385 = vmatprep.subr.bf16.mxu0 0
    %386 = vmatpush1.bf16.msra.mxu0 0
    %387 = vmatprep.subr.bf16.mxu0 0
    %388 = vmatpush1.bf16.msra.mxu0 0
    %389 = vmatprep.subr.bf16.mxu0 0
    %390 = vmatpush1.bf16.msra.mxu0 0
    %391 = vmatprep.subr.bf16.mxu0 0
    %392 = vmatpush1.bf16.msra.mxu0 0
    %393 = vmatprep.subr.bf16.mxu0 0
    %394 = vmatpush1.bf16.msra.mxu0 0
    %395 = vmatprep.mubr.bf16.mxu0 0
    %396 = vmatmul.mubr.bf16.gmra.mrb[0].mxu0 %v291
    %v397 = vpop.f32.mrb[0].mxu0
    %v398 = vadd.f32 %v313, %v397
    %v399 = vpop.f32.mrb[0].mxu0
    %v400 = vpop.f32.mrb[0].mxu0
    %v401 = vadd.f32 %v313, %v400
    %v402 = vpop.f32.mrb[0].mxu0
    %403 = vdwg.mxu0
    %404 = vst [vmem:[#allocation10] sm:$0xff] %v398
    %405 = vst [vmem:[#allocation10 + $0x8] sm:$0xff] %v401
    // Predicated region
    $region46: #{tpu_custom_call.1} parent=1 // pred_check
      _
    $region47: #{tpu_custom_call.1} parent=1 // pred_check_branch
      %407 = sbr.rel (0) target = $region49
    $region48: #{tpu_custom_call.1} parent=1 // pred_region
      %s409 = ssub.s32 256, 256
      %410 = vsyncadd [#allocation4], %s409
      %s411 = sshll.u32 [#allocation10], 4
      %s412 = int_to_ptr.vmem [resolvable:$true] %s411
      %417 = dma.vmem_to_hbm [thread:$0]  %s412, 256, %s7, [#allocation4], 128, 128, 8
    $region49: #{tpu_custom_call.1} parent=1 // pred_fallthru
      _
    // Predicated region
    $region50: #{tpu_custom_call.1} parent=1 // pred_check
      _
    $region51: #{tpu_custom_call.1} parent=1 // pred_check_branch
      %419 = sbr.rel (0) target = $region53
    $region52: #{tpu_custom_call.1} parent=1 // pred_region
      %420 = dma.done [#allocation4], 256
    $region53: #{tpu_custom_call.1} parent=1 // pred_fallthru
      _
    %421 = vsyncpa [#allocation3], 1
    %422 = vsyncpa [#allocation6], 1
    %423 = vsyncpa [#allocation9], 1
    %424 = vsyncpa [#allocation4], 1

</llo_original>
